<compile_context>
chip_gen: v7x
topology: tpu7x:2x2x1
jax: 0.10.0
libtpu: 0.0.40
codegen_flags: <defaults>
</compile_context>

<pallas_src>
import functools

import jax
import jax.numpy as jnp
from jax import lax
from jax.experimental import pallas as pl
from jax.experimental.pallas import tpu as pltpu

_BN_EPS = 1e-5


def channel_gate_kernel(x_ref, w1_ref, b1_ref, w2_ref, b2_ref, gate_ref, acc_ref):
    """x_ref: (bt, C, hw_tile); gate_ref: (bt, C); acc_ref: (bt, C) f32 scratch."""
    hw_idx = pl.program_id(1)

    @pl.when(hw_idx == 0)
    def _():
        acc_ref[...] = jnp.zeros_like(acc_ref)

    # Accumulate the spatial sum in f32 (mean's 1/HW is folded into w1/b1).
    acc_ref[...] += jnp.sum(x_ref[...].astype(jnp.float32), axis=-1)

    @pl.when(hw_idx == pl.num_programs(1) - 1)
    def _():
        # gate_c_fc_0 + (folded) gate_c_bn_1: Linear(C -> C//r)
        h = jnp.dot(acc_ref[...], w1_ref[...],
                    preferred_element_type=jnp.float32) + b1_ref[...]
        # gate_c_relu_1
        h = jnp.maximum(h, 0.0)
        # gate_c_fc_final: Linear(C//r -> C)
        gate = jnp.dot(h, w2_ref[...],
                       preferred_element_type=jnp.float32) + b2_ref[...]
        gate_ref[...] = gate.astype(gate_ref.dtype)


def _pick_hw_tile(HW, bt, C, itemsize, budget_bytes=8 << 20):
    """Largest multiple of 128 dividing HW that keeps 2x double-buffered x tiles
    within `budget_bytes`; falls back to a full-extent block."""
    if HW % 128 != 0:
        return HW
    max_by_budget = max(128, budget_bytes // (2 * bt * C * itemsize))
    cap = min(HW, 2048, (max_by_budget // 128) * 128)
    t = max(128, (cap // 128) * 128)
    while t >= 128:
        if HW % t == 0:
            return t
        t -= 128
    return HW


def channel_gate(x, params):
    """x: (B, C, H, W) NCHW (f32 or bf16); params: (w1, b1, gamma, beta, mean, var, w2, b2)."""
    B, C, H, W = x.shape
    assert H == W, "avg_pool2d(kernel=H, stride=H) collapses to 1x1 only for square input"
    HW = H * W
    w1, b1, gamma, beta, mean, var, w2, b2 = params

    # Fold eval-mode BatchNorm (running stats) + the 1/HW pooling scale into Linear #1.
    scale = (gamma * lax.rsqrt(var + _BN_EPS)).astype(jnp.float32)   # (1, Cr)
    w1f = (w1.astype(jnp.float32) * scale) / HW                      # (C, Cr)
    b1f = (b1.astype(jnp.float32) - mean.astype(jnp.float32)) * scale + beta.astype(jnp.float32)
    w2f = w2.astype(jnp.float32)
    b2f = b2.astype(jnp.float32)

    x_r = x.reshape(B, C, HW)  # keep HBM dtype; kernel upcasts for accumulation

    bt = 8 if B % 8 == 0 else B
    hw_tile = _pick_hw_tile(HW, bt, C, x_r.dtype.itemsize)
    grid = (B // bt, HW // hw_tile)

    gate = pl.pallas_call(
        channel_gate_kernel,
        out_shape=jax.ShapeDtypeStruct((B, C), jnp.float32),
        grid_spec=pltpu.PrefetchScalarGridSpec(
            num_scalar_prefetch=0,
            grid=grid,
            in_specs=[
                pl.BlockSpec((bt, C, hw_tile), lambda b, s: (b, 0, s)),
                pl.BlockSpec(w1f.shape, lambda b, s: (0, 0)),
                pl.BlockSpec(b1f.shape, lambda b, s: (0, 0)),
                pl.BlockSpec(w2f.shape, lambda b, s: (0, 0)),
                pl.BlockSpec(b2f.shape, lambda b, s: (0, 0)),
            ],
            out_specs=pl.BlockSpec((bt, C), lambda b, s: (b, 0)),
            scratch_shapes=[pltpu.VMEM((bt, C), jnp.float32)],
        ),
        compiler_params=pltpu.CompilerParams(
            dimension_semantics=("parallel", "arbitrary"),
            vmem_limit_bytes=32 * 1024 * 1024,
        ),
    )(x_r, w1f, b1f, w2f, b2f)

    # unsqueeze + expand_as(x): leave the broadcast to XLA so it fuses with the
    # downstream elementwise consumer (BAM multiplies the gate into x anyway).
    return jnp.broadcast_to(gate[:, :, None, None], (B, C, H, W)).astype(x.dtype)


if __name__ == "__main__":
    B, C, H, W = 2, 64, 16, 16
    reduction_ratio = 16
    Cr = C // reduction_ratio

    keys = jax.random.split(jax.random.PRNGKey(0), 9)
    x = jax.random.normal(keys[0], (B, C, H, W), jnp.float32)

    # Deterministic synthetic parameters (Linear stored as (in, out); bias/BN as (1, dim)).
    w1 = jax.random.normal(keys[1], (C, Cr), jnp.float32) * 0.1
    b1 = jax.random.normal(keys[2], (1, Cr), jnp.float32) * 0.1
    gamma = 1.0 + jax.random.normal(keys[3], (1, Cr), jnp.float32) * 0.1
    beta = jax.random.normal(keys[4], (1, Cr), jnp.float32) * 0.1
    run_mean = jax.random.normal(keys[5], (1, Cr), jnp.float32) * 0.1
    run_var = jax.random.uniform(keys[6], (1, Cr), jnp.float32, minval=0.5, maxval=1.5)
    w2 = jax.random.normal(keys[7], (Cr, C), jnp.float32) * 0.1
    b2 = jax.random.normal(keys[8], (1, C), jnp.float32) * 0.1
    params = (w1, b1, gamma, beta, run_mean, run_var, w2, b2)

    out = jax.block_until_ready(channel_gate(x, params))

    # Pure-JAX reference for correctness (unfolded BN, explicit mean pooling).
    pooled = x.reshape(B, C, H * W).mean(-1)
    h = pooled @ w1 + b1
    h = (h - run_mean) * lax.rsqrt(run_var + _BN_EPS) * gamma + beta
    h = jnp.maximum(h, 0.0)
    gate = h @ w2 + b2
    ref = jnp.broadcast_to(gate[:, :, None, None], (B, C, H, W))

    assert out.shape == (B, C, H, W)
    assert jnp.allclose(out, ref, atol=1e-4, rtol=1e-4), "mismatch vs reference"
    print("KERNEL_OK")
</pallas_src>

<mosaic_0001>
module attributes {stable_mosaic.version = 11 : i64} {
  func.func @channel_gate_kernel(%arg0: i32, %arg1: i32, %arg2: memref<2x64x256xf32, #tpu.memory_space<vmem>>, %arg3: memref<64x4xf32, #tpu.memory_space<vmem>>, %arg4: memref<1x4xf32, #tpu.memory_space<vmem>>, %arg5: memref<4x64xf32, #tpu.memory_space<vmem>>, %arg6: memref<1x64xf32, #tpu.memory_space<vmem>>, %arg7: memref<2x64xf32, #tpu.memory_space<vmem>>, %arg8: memref<2x64xf32, #tpu.memory_space<vmem>>) attributes {dimension_semantics = [#tpu.dimension_semantics<parallel>, #tpu.dimension_semantics<arbitrary>], iteration_bounds = array<i64: 1, 1>, scalar_prefetch = 0 : i64, scratch_operands = 1 : i64, tpu.core_type = #tpu.core_type<tc>, window_params = [{transform_indices = @transform_0, window_bounds = array<i64: 2, 64, 256>}, {pipeline_mode = #tpu.pipeline_mode<synchronous>, transform_indices = @transform_1, window_bounds = array<i64: 64, 4>}, {pipeline_mode = #tpu.pipeline_mode<synchronous>, transform_indices = @transform_2, window_bounds = array<i64: 1, 4>}, {pipeline_mode = #tpu.pipeline_mode<synchronous>, transform_indices = @transform_3, window_bounds = array<i64: 4, 64>}, {pipeline_mode = #tpu.pipeline_mode<synchronous>, transform_indices = @transform_4, window_bounds = array<i64: 1, 64>}, {transform_indices = @transform_5, window_bounds = array<i64: 2, 64>}]} {
    %c0_i32 = arith.constant 0 : i32
    %0 = arith.cmpi eq, %arg1, %c0_i32 : i32
    %1 = arith.extui %0 : i1 to i32
    %c0_i32_0 = arith.constant 0 : i32
    %2 = arith.cmpi ne, %1, %c0_i32_0 : i32
    scf.if %2 {
      %cst_9 = arith.constant 0.000000e+00 : f32
      %11 = vector.broadcast %cst_9 : f32 to vector<2x64xf32>
      %c0_10 = arith.constant 0 : index
      %c0_11 = arith.constant 0 : index
      %12 = vector.load %arg8[%c0_10, %c0_11] : memref<2x64xf32, #tpu.memory_space<vmem>>, vector<2x64xf32>
      tpu.vector_store %arg8[%c0_10, %c0_11], %11 {strides = array<i32>} : memref<2x64xf32, #tpu.memory_space<vmem>>, vector<2x64xf32>,
    } else {
    }
    %c0 = arith.constant 0 : index
    %c0_1 = arith.constant 0 : index
    %3 = vector.load %arg8[%c0, %c0_1] : memref<2x64xf32, #tpu.memory_space<vmem>>, vector<2x64xf32>
    %c0_2 = arith.constant 0 : index
    %c0_3 = arith.constant 0 : index
    %c0_4 = arith.constant 0 : index
    %4 = vector.load %arg2[%c0_2, %c0_3, %c0_4] : memref<2x64x256xf32, #tpu.memory_space<vmem>>, vector<2x64x256xf32>
    %cst = arith.constant dense<0.000000e+00> : vector<2x64xf32>
    %5 = vector.multi_reduction <add>, %4, %cst [2] : vector<2x64x256xf32> to vector<2x64xf32>
    %6 = arith.addf %3, %5 : vector<2x64xf32>
    %c0_5 = arith.constant 0 : index
    %c0_6 = arith.constant 0 : index
    %7 = vector.load %arg8[%c0_5, %c0_6] : memref<2x64xf32, #tpu.memory_space<vmem>>, vector<2x64xf32>
    tpu.vector_store %arg8[%c0_5, %c0_6], %6 {strides = array<i32>} : memref<2x64xf32, #tpu.memory_space<vmem>>, vector<2x64xf32>,
    %c0_i32_7 = arith.constant 0 : i32
    %8 = arith.cmpi eq, %arg1, %c0_i32_7 : i32
    %9 = arith.extui %8 : i1 to i32
    %c0_i32_8 = arith.constant 0 : i32
    %10 = arith.cmpi ne, %9, %c0_i32_8 : i32
    scf.if %10 {
      %c0_9 = arith.constant 0 : index
      %c0_10 = arith.constant 0 : index
      %11 = vector.load %arg8[%c0_9, %c0_10] : memref<2x64xf32, #tpu.memory_space<vmem>>, vector<2x64xf32>
      %c0_11 = arith.constant 0 : index
      %c0_12 = arith.constant 0 : index
      %12 = vector.load %arg3[%c0_11, %c0_12] : memref<64x4xf32, #tpu.memory_space<vmem>>, vector<64x4xf32>
      %cst_13 = arith.constant dense<0.000000e+00> : vector<2x4xf32>
      %13 = tpu.matmul %11, %12, %cst_13 {dimension_numbers = #tpu.dot_dimension_numbers<[1], [0], [0], [1], [0, 0, 1, 1], [], []>} : vector<2x64xf32>, vector<64x4xf32>, vector<2x4xf32> -> vector<2x4xf32>
      %c0_14 = arith.constant 0 : index
      %c0_15 = arith.constant 0 : index
      %14 = vector.load %arg4[%c0_14, %c0_15] : memref<1x4xf32, #tpu.memory_space<vmem>>, vector<1x4xf32>
      %15 = vector.broadcast %14 : vector<1x4xf32> to vector<2x4xf32>
      %16 = arith.addf %13, %15 : vector<2x4xf32>
      %cst_16 = arith.constant 0.000000e+00 : f32
      %17 = vector.broadcast %cst_16 : f32 to vector<2x4xf32>
      %18 = arith.maximumf %16, %17 : vector<2x4xf32>
      %c0_17 = arith.constant 0 : index
      %c0_18 = arith.constant 0 : index
      %19 = vector.load %arg5[%c0_17, %c0_18] : memref<4x64xf32, #tpu.memory_space<vmem>>, vector<4x64xf32>
      %cst_19 = arith.constant dense<0.000000e+00> : vector<2x64xf32>
      %20 = tpu.matmul %18, %19, %cst_19 {dimension_numbers = #tpu.dot_dimension_numbers<[1], [0], [0], [1], [0, 0, 1, 1], [], []>} : vector<2x4xf32>, vector<4x64xf32>, vector<2x64xf32> -> vector<2x64xf32>
      %c0_20 = arith.constant 0 : index
      %c0_21 = arith.constant 0 : index
      %21 = vector.load %arg6[%c0_20, %c0_21] : memref<1x64xf32, #tpu.memory_space<vmem>>, vector<1x64xf32>
      %22 = vector.broadcast %21 : vector<1x64xf32> to vector<2x64xf32>
      %23 = arith.addf %20, %22 : vector<2x64xf32>
      %c0_22 = arith.constant 0 : index
      %c0_23 = arith.constant 0 : index
      %24 = vector.load %arg7[%c0_22, %c0_23] : memref<2x64xf32, #tpu.memory_space<vmem>>, vector<2x64xf32>
      tpu.vector_store %arg7[%c0_22, %c0_23], %23 {strides = array<i32>} : memref<2x64xf32, #tpu.memory_space<vmem>>, vector<2x64xf32>,
    } else {
    }
    return
  }
  func.func @transform_0(%arg0: i32, %arg1: i32) -> (i32, i32, i32) {
    %c0_i32 = arith.constant 0 : i32
    %c0_i32_0 = arith.constant 0 : i32
    return %arg0, %c0_i32, %arg1 : i32, i32, i32
  }
  func.func @transform_1(%arg0: i32, %arg1: i32) -> (i32, i32) {
    %c0_i32 = arith.constant 0 : i32
    %c0_i32_0 = arith.constant 0 : i32
    %c0_i32_1 = arith.constant 0 : i32
    return %c0_i32, %c0_i32_0 : i32, i32
  }
  func.func @transform_2(%arg0: i32, %arg1: i32) -> (i32, i32) {
    %c0_i32 = arith.constant 0 : i32
    %c0_i32_0 = arith.constant 0 : i32
    %c0_i32_1 = arith.constant 0 : i32
    return %c0_i32, %c0_i32_0 : i32, i32
  }
  func.func @transform_3(%arg0: i32, %arg1: i32) -> (i32, i32) {
    %c0_i32 = arith.constant 0 : i32
    %c0_i32_0 = arith.constant 0 : i32
    %c0_i32_1 = arith.constant 0 : i32
    return %c0_i32, %c0_i32_0 : i32, i32
  }
  func.func @transform_4(%arg0: i32, %arg1: i32) -> (i32, i32) {
    %c0_i32 = arith.constant 0 : i32
    %c0_i32_0 = arith.constant 0 : i32
    %c0_i32_1 = arith.constant 0 : i32
    return %c0_i32, %c0_i32_0 : i32, i32
  }
  func.func @transform_5(%arg0: i32, %arg1: i32) -> (i32, i32) {
    %c0_i32 = arith.constant 0 : i32
    %c0_i32_0 = arith.constant 0 : i32
    return %arg0, %c0_i32 : i32, i32
  }
}

</mosaic_0001>

<llo_original>
// kernel: tpu_custom_call.1
$region0: #{tpu_custom_call.1}
  #allocation0 [shape = 'u32[]', space=smem, size = 0x4, offset = 0x4, fixed_abs, tag = 'smem constant byte address 0x4 - core index']
  #allocation1 [shape = 'u32[144,128]{1,0:T(1,128)}', space=vmem, size = 0x12000, scoped, tag = 'internal scratch']
  #allocation2 [shape = 'f32[2,64]{1,0:T(2,128)}', space=vmem, size = 0x400, scoped, tag = 'scratch operand']
  %s0 = inlined_call_operand.hbm [shape: f32[2,64,256], index: 0, kind: input, shape index: {}]
  %s1 = inlined_call_operand.vmem [shape: f32[64,4], index: 1, kind: input, shape index: {}]
  %s2 = inlined_call_operand.vmem [shape: f32[1,4], index: 2, kind: input, shape index: {}]
  %s3 = inlined_call_operand.vmem [shape: f32[4,64], index: 3, kind: input, shape index: {}]
  %s4 = inlined_call_operand.vmem [shape: f32[1,64], index: 4, kind: input, shape index: {}]
  %s5 = inlined_call_operand.hbm [shape: f32[2,64], index: 5, kind: output, shape index: {}]
  %s6 = sld [smem:[#allocation0]]
  $region42: #{tpu_custom_call.1} parent=0
    _
  %s8 = ssub.s32 1, %s6
  %s9 = scalar_select 0, %s8, %s6
  $region1: #{tpu_custom_call.1} parent=0
    #allocation3 [shape = 'u8[131072]{0}', space=vmem, size = 0x20000, scoped, tag = 'input window, operand 0, single buffered']
    #allocation4 [shape = 's32[1]{0}', space=sflag, size = 0x4, scoped, tag = 'scoped memory for tpu_custom_call.1']
    #allocation5 [shape = 's32[1]{0}', space=sflag, size = 0x4, scoped, tag = 'scoped memory for tpu_custom_call.1']
    #allocation6 [shape = 'u8[1024]{0}', space=vmem, size = 0x400, scoped, tag = 'output window, operand 0, single buffered']
    %10 = vsyncpa [#allocation4], 0
    %11 = vsyncpa [#allocation5], 0
    // Predicated region
    $region2: #{tpu_custom_call.1} parent=1 // pred_check
      _
    $region3: #{tpu_custom_call.1} parent=1 // pred_check_branch
      %13 = sbr.rel (0) target = $region5
    $region4: #{tpu_custom_call.1} parent=1 // pred_region
      %s15 = ssub.s32 4096, 4096
      %16 = vsyncadd [#allocation4], %s15
      %s17 = sshll.u32 [#allocation3], 4
      %s18 = int_to_ptr.vmem [resolvable:$true] %s17
      %23 = dma.hbm_to_vmem [thread:$0]  %s0, 4096, %s18, [#allocation4], 256, 256, 16
    $region5: #{tpu_custom_call.1} parent=1 // pred_fallthru
      _
    // Predicated region
    $region6: #{tpu_custom_call.1} parent=1 // pred_check
      _
    $region7: #{tpu_custom_call.1} parent=1 // pred_check_branch
      %25 = sbr.rel (0) target = $region9
    $region8: #{tpu_custom_call.1} parent=1 // pred_region
      _
    $region9: #{tpu_custom_call.1} parent=1 // pred_fallthru
      _
    // Predicated region
    $region10: #{tpu_custom_call.1} parent=1 // pred_check
      _
    $region11: #{tpu_custom_call.1} parent=1 // pred_check_branch
      %27 = sbr.rel (0) target = $region13
    $region12: #{tpu_custom_call.1} parent=1 // pred_region
      _
    $region13: #{tpu_custom_call.1} parent=1 // pred_fallthru
      _
    // Predicated region
    $region14: #{tpu_custom_call.1} parent=1 // pred_check
      _
    $region15: #{tpu_custom_call.1} parent=1 // pred_check_branch
      %29 = sbr.rel (0) target = $region17
    $region16: #{tpu_custom_call.1} parent=1 // pred_region
      _
    $region17: #{tpu_custom_call.1} parent=1 // pred_fallthru
      _
    // Predicated region
    $region18: #{tpu_custom_call.1} parent=1 // pred_check
      _
    $region19: #{tpu_custom_call.1} parent=1 // pred_check_branch
      %31 = sbr.rel (0) target = $region21
    $region20: #{tpu_custom_call.1} parent=1 // pred_region
      _
    $region21: #{tpu_custom_call.1} parent=1 // pred_fallthru
      _
    // Predicated region
    $region22: #{tpu_custom_call.1} parent=1 // pred_check
      _
    $region23: #{tpu_custom_call.1} parent=1 // pred_check_branch
      %33 = sbr.rel (0) target = $region25
    $region24: #{tpu_custom_call.1} parent=1 // pred_region
      %34 = dma.done [#allocation4], 4096
    $region25: #{tpu_custom_call.1} parent=1 // pred_fallthru
      _
    %p35 = scmp.eq.s32.totalorder 0, 0
    // Predicated region
    $region26: #{tpu_custom_call.1} parent=1 // pred_check
      %p36 = pneg %p35
    $region27: #{tpu_custom_call.1} parent=1 // pred_check_branch
      %38 = sbr.rel (%p36) target = $region29
    $region28: #{tpu_custom_call.1} parent=1 // pred_region
      %vm39 = vcmask 517120
      %40 = vst.msk [vmem:[#allocation2] sm:$0x3] %vm39, 0.0
    $region29: #{tpu_custom_call.1} parent=1 // pred_fallthru
      _
    %v41 = vld [vmem:[#allocation2] sm:$0x3]
    %v42 = vld [vmem:[#allocation3] sm:$0xff]
    %v43 = vld [vmem:[#allocation3 + $0x8] sm:$0xff]
    %v44 = vld [vmem:[#allocation3 + $0x10] sm:$0xff]
    %v45 = vld [vmem:[#allocation3 + $0x18] sm:$0xff]
    %v46 = vld [vmem:[#allocation3 + $0x20] sm:$0xff]
    %v47 = vld [vmem:[#allocation3 + $0x28] sm:$0xff]
    %v48 = vld [vmem:[#allocation3 + $0x30] sm:$0xff]
    %v49 = vld [vmem:[#allocation3 + $0x38] sm:$0xff]
    %v50 = vld [vmem:[#allocation3 + $0x40] sm:$0xff]
    %v51 = vld [vmem:[#allocation3 + $0x48] sm:$0xff]
    %v52 = vld [vmem:[#allocation3 + $0x50] sm:$0xff]
    %v53 = vld [vmem:[#allocation3 + $0x58] sm:$0xff]
    %v54 = vld [vmem:[#allocation3 + $0x60] sm:$0xff]
    %v55 = vld [vmem:[#allocation3 + $0x68] sm:$0xff]
    %v56 = vld [vmem:[#allocation3 + $0x70] sm:$0xff]
    %v57 = vld [vmem:[#allocation3 + $0x78] sm:$0xff]
    %v58 = vld [vmem:[#allocation3 + $0x80] sm:$0xff]
    %v59 = vld [vmem:[#allocation3 + $0x88] sm:$0xff]
    %v60 = vld [vmem:[#allocation3 + $0x90] sm:$0xff]
    %v61 = vld [vmem:[#allocation3 + $0x98] sm:$0xff]
    %v62 = vld [vmem:[#allocation3 + $0xa0] sm:$0xff]
    %v63 = vld [vmem:[#allocation3 + $0xa8] sm:$0xff]
    %v64 = vld [vmem:[#allocation3 + $0xb0] sm:$0xff]
    %v65 = vld [vmem:[#allocation3 + $0xb8] sm:$0xff]
    %v66 = vld [vmem:[#allocation3 + $0xc0] sm:$0xff]
    %v67 = vld [vmem:[#allocation3 + $0xc8] sm:$0xff]
    %v68 = vld [vmem:[#allocation3 + $0xd0] sm:$0xff]
    %v69 = vld [vmem:[#allocation3 + $0xd8] sm:$0xff]
    %v70 = vld [vmem:[#allocation3 + $0xe0] sm:$0xff]
    %v71 = vld [vmem:[#allocation3 + $0xe8] sm:$0xff]
    %v72 = vld [vmem:[#allocation3 + $0xf0] sm:$0xff]
    %v73 = vld [vmem:[#allocation3 + $0xf8] sm:$0xff]
    %v74 = vadd.f32 %v42, %v43
    %75 = vadd.xlane.f32.xlu0 %v74
    %v76 = vpop.xlane.xlu0 %75
    %v77 = vadd.f32 %v44, %v45
    %78 = vadd.xlane.f32.xlu0 %v77
    %v79 = vpop.xlane.xlu0 %78
    %v80 = vadd.f32 %v46, %v47
    %81 = vadd.xlane.f32.xlu0 %v80
    %v82 = vpop.xlane.xlu0 %81
    %v83 = vadd.f32 %v48, %v49
    %84 = vadd.xlane.f32.xlu0 %v83
    %v85 = vpop.xlane.xlu0 %84
    %v86 = vadd.f32 %v50, %v51
    %87 = vadd.xlane.f32.xlu0 %v86
    %v88 = vpop.xlane.xlu0 %87
    %v89 = vadd.f32 %v52, %v53
    %90 = vadd.xlane.f32.xlu0 %v89
    %v91 = vpop.xlane.xlu0 %90
    %v92 = vadd.f32 %v54, %v55
    %93 = vadd.xlane.f32.xlu0 %v92
    %v94 = vpop.xlane.xlu0 %93
    %v95 = vadd.f32 %v56, %v57
    %96 = vadd.xlane.f32.xlu0 %v95
    %v97 = vpop.xlane.xlu0 %96
    %v98 = vadd.f32 %v58, %v59
    %99 = vadd.xlane.f32.xlu0 %v98
    %v100 = vpop.xlane.xlu0 %99
    %v101 = vadd.f32 %v60, %v61
    %102 = vadd.xlane.f32.xlu0 %v101
    %v103 = vpop.xlane.xlu0 %102
    %v104 = vadd.f32 %v62, %v63
    %105 = vadd.xlane.f32.xlu0 %v104
    %v106 = vpop.xlane.xlu0 %105
    %v107 = vadd.f32 %v64, %v65
    %108 = vadd.xlane.f32.xlu0 %v107
    %v109 = vpop.xlane.xlu0 %108
    %v110 = vadd.f32 %v66, %v67
    %111 = vadd.xlane.f32.xlu0 %v110
    %v112 = vpop.xlane.xlu0 %111
    %v113 = vadd.f32 %v68, %v69
    %114 = vadd.xlane.f32.xlu0 %v113
    %v115 = vpop.xlane.xlu0 %114
    %v116 = vadd.f32 %v70, %v71
    %117 = vadd.xlane.f32.xlu0 %v116
    %v118 = vpop.xlane.xlu0 %117
    %v119 = vadd.f32 %v72, %v73
    %120 = vadd.xlane.f32.xlu0 %v119
    %v121 = vpop.xlane.xlu0 %120
    %v138 = vlaneseq
    %v139 = vand.u32 %v138, 127
    %v140 = vlaneseq
    %v141 = vshrl.u32 %v140, 7
    %v142 = vsub.s32 %v139, %v141
    %v143 = vrot.slane %v76, %v142
    %v144 = vadd.s32 %v139, 4294967288
    %v145 = vlaneseq
    %v146 = vshrl.u32 %v145, 7
    %v147 = vsub.s32 %v144, %v146
    %v148 = vrot.slane %v79, %v147
    %vm149 = vcmask 130112
    %v150 = vsel %vm149, %v148, %v143
    %v151 = vadd.s32 %v139, 4294967280
    %v152 = vlaneseq
    %v153 = vshrl.u32 %v152, 7
    %v154 = vsub.s32 %v151, %v153
    %v155 = vrot.slane %v82, %v154
    %vm156 = vcmask 195712
    %v157 = vsel %vm156, %v155, %v150
    %v158 = vadd.s32 %v139, 4294967272
    %v159 = vlaneseq
    %v160 = vshrl.u32 %v159, 7
    %v161 = vsub.s32 %v158, %v160
    %v162 = vrot.slane %v85, %v161
    %vm163 = vcmask 261312
    %v164 = vsel %vm163, %v162, %v157
    %v165 = vadd.s32 %v139, 4294967264
    %v166 = vlaneseq
    %v167 = vshrl.u32 %v166, 7
    %v168 = vsub.s32 %v165, %v167
    %v169 = vrot.slane %v88, %v168
    %vm170 = vcmask 326912
    %v171 = vsel %vm170, %v169, %v164
    %v172 = vadd.s32 %v139, 4294967256
    %v173 = vlaneseq
    %v174 = vshrl.u32 %v173, 7
    %v175 = vsub.s32 %v172, %v174
    %v176 = vrot.slane %v91, %v175
    %vm177 = vcmask 392512
    %v178 = vsel %vm177, %v176, %v171
    %v179 = vadd.s32 %v139, 4294967248
    %v180 = vlaneseq
    %v181 = vshrl.u32 %v180, 7
    %v182 = vsub.s32 %v179, %v181
    %v183 = vrot.slane %v94, %v182
    %vm184 = vcmask 458112
    %v185 = vsel %vm184, %v183, %v178
    %v186 = vadd.s32 %v139, 4294967240
    %v187 = vlaneseq
    %v188 = vshrl.u32 %v187, 7
    %v189 = vsub.s32 %v186, %v188
    %v190 = vrot.slane %v97, %v189
    %vm191 = vcmask 523712
    %v192 = vsel %vm191, %v190, %v185
    %v193 = vlaneseq
    %v194 = vshrl.u32 %v193, 7
    %v195 = vsub.s32 %v139, %v194
    %v196 = vrot.slane %v100, %v195
    %v197 = vlaneseq
    %v198 = vshrl.u32 %v197, 7
    %v199 = vsub.s32 %v144, %v198
    %v200 = vrot.slane %v103, %v199
    %v201 = vsel %vm149, %v200, %v196
    %v202 = vlaneseq
    %v203 = vshrl.u32 %v202, 7
    %v204 = vsub.s32 %v151, %v203
    %v205 = vrot.slane %v106, %v204
    %v206 = vsel %vm156, %v205, %v201
    %v207 = vlaneseq
    %v208 = vshrl.u32 %v207, 7
    %v209 = vsub.s32 %v158, %v208
    %v210 = vrot.slane %v109, %v209
    %v211 = vsel %vm163, %v210, %v206
    %v212 = vlaneseq
    %v213 = vshrl.u32 %v212, 7
    %v214 = vsub.s32 %v165, %v213
    %v215 = vrot.slane %v112, %v214
    %v216 = vsel %vm170, %v215, %v211
    %v217 = vlaneseq
    %v218 = vshrl.u32 %v217, 7
    %v219 = vsub.s32 %v172, %v218
    %v220 = vrot.slane %v115, %v219
    %v221 = vsel %vm177, %v220, %v216
    %v222 = vlaneseq
    %v223 = vshrl.u32 %v222, 7
    %v224 = vsub.s32 %v179, %v223
    %v225 = vrot.slane %v118, %v224
    %v226 = vsel %vm184, %v225, %v221
    %v227 = vlaneseq
    %v228 = vshrl.u32 %v227, 7
    %v229 = vsub.s32 %v186, %v228
    %v230 = vrot.slane %v121, %v229
    %v231 = vsel %vm191, %v230, %v226
    %vm232 = vcmask 1041409
    %v233 = vsel %vm232, %v231, %v192
    %v235 = vadd.f32 %v41, %v233
    %vm236 = vcmask 517120
    %237 = vst.msk [vmem:[#allocation2] sm:$0x3] %vm236, %v235
    // Predicated region
    $region30: #{tpu_custom_call.1} parent=1 // pred_check
      %p238 = pneg %p35
    $region31: #{tpu_custom_call.1} parent=1 // pred_check_branch
      %240 = sbr.rel (%p238) target = $region33
    $region32: #{tpu_custom_call.1} parent=1 // pred_region
      %v241 = vld [vmem:[#allocation2] sm:$0x3]
      %v242 = vld [vmem:[%s1] sm:$0xff]
      %v243 = vld [vmem:[%s1 + $0x8] sm:$0xff]
      %v244 = vld [vmem:[%s1 + $0x10] sm:$0xff]
      %v245 = vld [vmem:[%s1 + $0x18] sm:$0xff]
      %v246 = vld [vmem:[%s1 + $0x20] sm:$0xff]
      %v247 = vld [vmem:[%s1 + $0x28] sm:$0xff]
      %v248 = vld [vmem:[%s1 + $0x30] sm:$0xff]
      %v249 = vld [vmem:[%s1 + $0x38] sm:$0xff]
      %v250 = vld [vmem:[%s2] sm:$0x1]
      %v252 = vlaneseq
      %v253 = vshrl.u32 %v252, 7
      %v254 = vsub.s32 0, %v253
      %v255 = vrot.slane %v250, %v254
      %vm257 = vcmask 523264
      %v259 = vsel %vm257, %v241, 0
      %261 = vmatprep.subr.mxu0 0.0
      %262 = vmatpush1.msra.mxu0 %v242
      %263 = vmatprep.subr.mxu0 0.0
      %264 = vmatpush1.msra.mxu0 %v243
      %265 = vmatprep.subr.mxu0 0.0
      %266 = vmatpush1.msra.mxu0 %v244
      %267 = vmatprep.subr.mxu0 0.0
      %268 = vmatpush1.msra.mxu0 %v245
      %269 = vmatprep.subr.mxu0 0.0
      %270 = vmatpush1.msra.mxu0 %v246
      %271 = vmatprep.subr.mxu0 0.0
      %272 = vmatpush1.msra.mxu0 %v247
      %273 = vmatprep.subr.mxu0 0.0
      %274 = vmatpush1.msra.mxu0 %v248
      %275 = vmatprep.subr.mxu0 0.0
      %276 = vmatpush1.msra.mxu0 %v249
      %277 = vmatprep.subr.mxu0 0.0
      %278 = vmatpush1.msra.mxu0 0.0
      %279 = vmatprep.subr.mxu0 0.0
      %280 = vmatpush1.msra.mxu0 0.0
      %281 = vmatprep.subr.mxu0 0.0
      %282 = vmatpush1.msra.mxu0 0.0
      %283 = vmatprep.subr.mxu0 0.0
      %284 = vmatpush1.msra.mxu0 0.0
      %285 = vmatprep.subr.mxu0 0.0
      %286 = vmatpush1.msra.mxu0 0.0
      %287 = vmatprep.subr.mxu0 0.0
      %288 = vmatpush1.msra.mxu0 0.0
      %289 = vmatprep.subr.mxu0 0.0
      %290 = vmatpush1.msra.mxu0 0.0
      %291 = vmatprep.subr.mxu0 0.0
      %292 = vmatpush1.msra.mxu0 0.0
      %293 = vmatprep.subr.mxu0 0.0
      %294 = vmatpush1.msra.mxu0 0.0
      %295 = vmatprep.subr.mxu0 0.0
      %296 = vmatpush1.msra.mxu0 0.0
      %297 = vmatprep.subr.mxu0 0.0
      %298 = vmatpush1.msra.mxu0 0.0
      %299 = vmatprep.subr.mxu0 0.0
      %300 = vmatpush1.msra.mxu0 0.0
      %301 = vmatprep.subr.mxu0 0.0
      %302 = vmatpush1.msra.mxu0 0.0
      %303 = vmatprep.subr.mxu0 0.0
      %304 = vmatpush1.msra.mxu0 0.0
      %305 = vmatprep.subr.mxu0 0.0
      %306 = vmatpush1.msra.mxu0 0.0
      %307 = vmatprep.subr.mxu0 0.0
      %308 = vmatpush1.msra.mxu0 0.0
      %309 = vmatprep.subr.mxu0 0.0
      %310 = vmatpush1.msra.mxu0 0.0
      %311 = vmatprep.subr.mxu0 0.0
      %312 = vmatpush1.msra.mxu0 0.0
      %313 = vmatprep.subr.mxu0 0.0
      %314 = vmatpush1.msra.mxu0 0.0
      %315 = vmatprep.subr.mxu0 0.0
      %316 = vmatpush1.msra.mxu0 0.0
      %317 = vmatprep.subr.mxu0 0.0
      %318 = vmatpush1.msra.mxu0 0.0
      %319 = vmatprep.subr.mxu0 0.0
      %320 = vmatpush1.msra.mxu0 0.0
      %321 = vmatprep.subr.mxu0 0.0
      %322 = vmatpush1.msra.mxu0 0.0
      %323 = vmatprep.subr.mxu0 0.0
      %324 = vmatpush1.msra.mxu0 0.0
      %325 = vmatprep.mubr.f32.mxu0 0.0
      %326 = vmatmul.mubr.f32.gmra.mrb[0].mxu0 %v259
      %v327 = vpop.f32.mrb[0].mxu0
      %v328 = vadd.f32 %v255, %v327
      %v329 = vpop.f32.mrb[0].mxu0
      %330 = vdwg.mxu0
      %v331 = vmax.f32 %v328, 0.0
      %v332 = vld [vmem:[%s3] sm:$0xf]
      %v333 = vld [vmem:[%s4] sm:$0x1]
      %v335 = vlaneseq
      %v336 = vshrl.u32 %v335, 7
      %v337 = vsub.s32 0, %v336
      %v338 = vrot.slane %v333, %v337
      %vm340 = vcmask 31744
      %v342 = vsel %vm340, %v331, 0
      %vm344 = vcmask 1043456
      %v346 = vsel %vm344, %v332, 0
      %348 = vmatprep.subr.mxu0 0.0
      %349 = vmatpush1.msra.mxu0 %v346
      %350 = vmatprep.subr.mxu0 0.0
      %351 = vmatpush1.msra.mxu0 0.0
      %352 = vmatprep.subr.mxu0 0.0
      %353 = vmatpush1.msra.mxu0 0.0
      %354 = vmatprep.subr.mxu0 0.0
      %355 = vmatpush1.msra.mxu0 0.0
      %356 = vmatprep.subr.mxu0 0.0
      %357 = vmatpush1.msra.mxu0 0.0
      %358 = vmatprep.subr.mxu0 0.0
      %359 = vmatpush1.msra.mxu0 0.0
      %360 = vmatprep.subr.mxu0 0.0
      %361 = vmatpush1.msra.mxu0 0.0
      %362 = vmatprep.subr.mxu0 0.0
      %363 = vmatpush1.msra.mxu0 0.0
      %364 = vmatprep.subr.mxu0 0.0
      %365 = vmatpush1.msra.mxu0 0.0
      %366 = vmatprep.subr.mxu0 0.0
      %367 = vmatpush1.msra.mxu0 0.0
      %368 = vmatprep.subr.mxu0 0.0
      %369 = vmatpush1.msra.mxu0 0.0
      %370 = vmatprep.subr.mxu0 0.0
      %371 = vmatpush1.msra.mxu0 0.0
      %372 = vmatprep.subr.mxu0 0.0
      %373 = vmatpush1.msra.mxu0 0.0
      %374 = vmatprep.subr.mxu0 0.0
      %375 = vmatpush1.msra.mxu0 0.0
      %376 = vmatprep.subr.mxu0 0.0
      %377 = vmatpush1.msra.mxu0 0.0
      %378 = vmatprep.subr.mxu0 0.0
      %379 = vmatpush1.msra.mxu0 0.0
      %380 = vmatprep.subr.mxu0 0.0
      %381 = vmatpush1.msra.mxu0 0.0
      %382 = vmatprep.subr.mxu0 0.0
      %383 = vmatpush1.msra.mxu0 0.0
      %384 = vmatprep.subr.mxu0 0.0
      %385 = vmatpush1.msra.mxu0 0.0
      %386 = vmatprep.subr.mxu0 0.0
      %387 = vmatpush1.msra.mxu0 0.0
      %388 = vmatprep.subr.mxu0 0.0
      %389 = vmatpush1.msra.mxu0 0.0
      %390 = vmatprep.subr.mxu0 0.0
      %391 = vmatpush1.msra.mxu0 0.0
      %392 = vmatprep.subr.mxu0 0.0
      %393 = vmatpush1.msra.mxu0 0.0
      %394 = vmatprep.subr.mxu0 0.0
      %395 = vmatpush1.msra.mxu0 0.0
      %396 = vmatprep.subr.mxu0 0.0
      %397 = vmatpush1.msra.mxu0 0.0
      %398 = vmatprep.subr.mxu0 0.0
      %399 = vmatpush1.msra.mxu0 0.0
      %400 = vmatprep.subr.mxu0 0.0
      %401 = vmatpush1.msra.mxu0 0.0
      %402 = vmatprep.subr.mxu0 0.0
      %403 = vmatpush1.msra.mxu0 0.0
      %404 = vmatprep.subr.mxu0 0.0
      %405 = vmatpush1.msra.mxu0 0.0
      %406 = vmatprep.subr.mxu0 0.0
      %407 = vmatpush1.msra.mxu0 0.0
      %408 = vmatprep.subr.mxu0 0.0
      %409 = vmatpush1.msra.mxu0 0.0
      %410 = vmatprep.subr.mxu0 0.0
      %411 = vmatpush1.msra.mxu0 0.0
      %412 = vmatprep.mubr.f32.mxu0 0.0
      %413 = vmatmul.mubr.f32.gmra.mrb[0].mxu0 %v342
      %v414 = vpop.f32.mrb[0].mxu0
      %v415 = vadd.f32 %v338, %v414
      %v416 = vpop.f32.mrb[0].mxu0
      %417 = vdwg.mxu0
      %418 = vst.msk [vmem:[#allocation6] sm:$0x3] %vm236, %v415
    $region33: #{tpu_custom_call.1} parent=1 // pred_fallthru
      _
    // Predicated region
    $region34: #{tpu_custom_call.1} parent=1 // pred_check
      _
    $region35: #{tpu_custom_call.1} parent=1 // pred_check_branch
      %420 = sbr.rel (0) target = $region37
    $region36: #{tpu_custom_call.1} parent=1 // pred_region
      %s422 = ssub.s32 32, 32
      %423 = vsyncadd [#allocation5], %s422
      %s425 = sshll.u32 [#allocation6], 4
      %s426 = int_to_ptr.vmem [resolvable:$true] %s425
      %428 = dma.vmem_to_hbm [thread:$0]  %s426, 32, %s5, [#allocation5]
    $region37: #{tpu_custom_call.1} parent=1 // pred_fallthru
      _
    // Predicated region
    $region38: #{tpu_custom_call.1} parent=1 // pred_check
      _
    $region39: #{tpu_custom_call.1} parent=1 // pred_check_branch
      %430 = sbr.rel (0) target = $region41
    $region40: #{tpu_custom_call.1} parent=1 // pred_region
      %431 = dma.done [#allocation5], 32
    $region41: #{tpu_custom_call.1} parent=1 // pred_fallthru
      _
    %432 = vsyncpa [#allocation4], 1
    %433 = vsyncpa [#allocation5], 1

</llo_original>
